<compile_context>
chip_gen: v6e
topology: v6e:2x2x1
jax: 0.10.0
libtpu: 0.0.40
codegen_flags: <defaults>
</compile_context>

<pallas_src>
import jax
import jax.numpy as jnp
from jax import lax
from jax.experimental import pallas as pl
from jax.experimental.pallas import tpu as pltpu


def lstm_fused_kernel(x_ref, wih_ref, whh_ref, h_out_ref):
    """Fused LSTM encoder: input projection + serial recurrence, all in VMEM.

    x_ref    : (T*Bp, Dp)  time-major flattened input, augmented with a
                           constant-1 column (bias) and zero padding.
    wih_ref  : (Dp, 4H)    augmented input weight  [W_ih^T ; (b_ih+b_hh) ; 0].
    whh_ref  : (H, 4H)     recurrent weight (transposed), resident in VMEM.
    h_out_ref: (Bp, H)     final hidden state h_T.
    """
    TB, _ = x_ref.shape
    Bp, H = h_out_ref.shape
    T = TB // Bp

    # One big MXU push: input projection (+ folded bias) for ALL timesteps.
    xproj = jnp.dot(x_ref[...], wih_ref[...],
                    preferred_element_type=jnp.float32)          # (T*Bp, 4H)

    # Recurrent weight loaded once, live across the whole unrolled loop.
    whh = whh_ref[...]                                            # (H, 4H)

    h = jnp.zeros((Bp, H), jnp.float32)
    c = jnp.zeros((Bp, H), jnp.float32)

    # T is static and small -> full Python unroll; all slices are static.
    # TODO(synk): for long sequences, chunk T over a grid axis with the state
    # carried in VMEM scratch instead of unrolling / holding the whole slab.
    for t in range(T):
        # Single fused (Bp,H) x (H,4H) MXU push per step.
        gates = xproj[t * Bp:(t + 1) * Bp, :] + jnp.dot(
            h, whh, preferred_element_type=jnp.float32)           # (Bp, 4H)

        # Two full-lane EUP passes instead of four masked 32-lane passes.
        sig = jax.nn.sigmoid(gates)
        tah = jnp.tanh(gates)

        i_g = sig[:, 0 * H:1 * H]
        f_g = sig[:, 1 * H:2 * H]
        g_g = tah[:, 2 * H:3 * H]
        o_g = sig[:, 3 * H:4 * H]

        c = f_g * c + i_g * g_g
        h = o_g * jnp.tanh(c)

    h_out_ref[...] = h.astype(h_out_ref.dtype)


def lstm_encoder(x, w_ih, w_hh, b_ih, b_hh):
    """x: (B, T, D) batch-first, like nn.LSTM(batch_first=True).
    w_ih: (4H, D), w_hh: (4H, H), b_ih/b_hh: (4H,). Returns h_n: (B, H)."""
    B, T, D = x.shape
    H = w_hh.shape[1]

    x = x.astype(jnp.float32)
    w_ih = w_ih.astype(jnp.float32)
    w_hh = w_hh.astype(jnp.float32)
    bias = (b_ih + b_hh).astype(jnp.float32)

    # Pad batch up to the sublane count (8): full-sublane vregs everywhere.
    # Padded rows compute harmless garbage and are sliced off below.
    Bp = max(8, ((B + 7) // 8) * 8)
    if Bp != B:
        x = jnp.pad(x, ((0, Bp - B), (0, 0), (0, 0)))

    # Augmented feature dim: [x | 1 | 0-pad] so the projection matmul also
    # applies (b_ih + b_hh); padded up to a sublane multiple (>= 8).
    Dp = max(8, ((D + 1 + 7) // 8) * 8)

    # Time-major flattened input slab (T*Bp, Dp).
    x_tm = jnp.transpose(x, (1, 0, 2)).reshape(T * Bp, D)
    x_aug = jnp.concatenate(
        [x_tm,
         jnp.ones((T * Bp, 1), jnp.float32),
         jnp.zeros((T * Bp, Dp - D - 1), jnp.float32)],
        axis=1)

    # Augmented input weight (Dp, 4H): rows = [W_ih^T ; bias ; 0].
    wih_aug = jnp.concatenate(
        [jnp.transpose(w_ih),
         bias[None, :],
         jnp.zeros((Dp - D - 1, 4 * H), jnp.float32)],
        axis=0)

    whh_t = jnp.transpose(w_hh)  # (H, 4H)

    h_pad = pl.pallas_call(
        lstm_fused_kernel,
        out_shape=jax.ShapeDtypeStruct((Bp, H), jnp.float32),
        grid_spec=pltpu.PrefetchScalarGridSpec(
            num_scalar_prefetch=0,
            grid=(1,),  # single grid step: everything VMEM-resident
            in_specs=[
                pl.BlockSpec((T * Bp, Dp), lambda i: (0, 0)),   # x slab (aug.)
                pl.BlockSpec((Dp, 4 * H), lambda i: (0, 0)),    # [W_ih^T; b; 0]
                pl.BlockSpec((H, 4 * H), lambda i: (0, 0)),     # W_hh^T
            ],
            out_specs=pl.BlockSpec((Bp, H), lambda i: (0, 0)),
        ),
        compiler_params=pltpu.CompilerParams(
            dimension_semantics=("arbitrary",),
            vmem_limit_bytes=64 * 1024 * 1024,
        ),
    )(x_aug, wih_aug, whh_t)

    return h_pad[:B]


def lstm_reference(x, w_ih, w_hh, b_ih, b_hh):
    """Pure-JAX reference matching PyTorch nn.LSTM gate ordering (i, f, g, o)."""
    B, T, D = x.shape
    H = w_hh.shape[1]
    bias = b_ih + b_hh

    def step(carry, x_t):
        h, c = carry
        gates = x_t @ w_ih.T + h @ w_hh.T + bias
        i = jax.nn.sigmoid(gates[:, 0 * H:1 * H])
        f = jax.nn.sigmoid(gates[:, 1 * H:2 * H])
        g = jnp.tanh(gates[:, 2 * H:3 * H])
        o = jax.nn.sigmoid(gates[:, 3 * H:4 * H])
        c = f * c + i * g
        h = o * jnp.tanh(c)
        return (h, c), None

    init = (jnp.zeros((B, H), jnp.float32), jnp.zeros((B, H), jnp.float32))
    (h, _), _ = jax.lax.scan(step, init, jnp.transpose(x, (1, 0, 2)))
    return h


if __name__ == "__main__":
    # Small shapes consistent with the module: batch=2, seq=8, input_dim=4, hidden=32.
    B, T, D, H = 2, 8, 4, 32

    key = jax.random.PRNGKey(0)
    kx, k1, k2, k3, k4 = jax.random.split(key, 5)

    # PyTorch-style init: uniform(-1/sqrt(H), 1/sqrt(H))
    bound = 1.0 / jnp.sqrt(jnp.float32(H))
    x = jax.random.normal(kx, (B, T, D), dtype=jnp.float32)
    w_ih = jax.random.uniform(k1, (4 * H, D), jnp.float32, -bound, bound)
    w_hh = jax.random.uniform(k2, (4 * H, H), jnp.float32, -bound, bound)
    b_ih = jax.random.uniform(k3, (4 * H,), jnp.float32, -bound, bound)
    b_hh = jax.random.uniform(k4, (4 * H,), jnp.float32, -bound, bound)

    h_n = lstm_encoder(x, w_ih, w_hh, b_ih, b_hh)
    h_n = jax.block_until_ready(h_n)

    h_ref = lstm_reference(x, w_ih, w_hh, b_ih, b_hh)
    assert h_n.shape == (B, H)
    assert jnp.allclose(h_n, h_ref, rtol=1e-4, atol=1e-4), "mismatch vs reference"

    print("KERNEL_OK")
</pallas_src>

<mosaic_0001>
module attributes {stable_mosaic.version = 11 : i64} {
  func.func @lstm_fused_kernel(%arg0: i32, %arg1: memref<64x8xf32, #tpu.memory_space<vmem>>, %arg2: memref<8x128xf32, #tpu.memory_space<vmem>>, %arg3: memref<32x128xf32, #tpu.memory_space<vmem>>, %arg4: memref<8x32xf32, #tpu.memory_space<vmem>>) attributes {dimension_semantics = [#tpu.dimension_semantics<arbitrary>], iteration_bounds = array<i64: 1>, scalar_prefetch = 0 : i64, scratch_operands = 0 : i64, tpu.core_type = #tpu.core_type<tc>, window_params = [{pipeline_mode = #tpu.pipeline_mode<synchronous>, transform_indices = @transform_0, window_bounds = array<i64: 64, 8>}, {pipeline_mode = #tpu.pipeline_mode<synchronous>, transform_indices = @transform_1, window_bounds = array<i64: 8, 128>}, {pipeline_mode = #tpu.pipeline_mode<synchronous>, transform_indices = @transform_2, window_bounds = array<i64: 32, 128>}, {pipeline_mode = #tpu.pipeline_mode<synchronous>, transform_indices = @transform_3, window_bounds = array<i64: 8, 32>}]} {
    %c0 = arith.constant 0 : index
    %c0_0 = arith.constant 0 : index
    %0 = vector.load %arg1[%c0, %c0_0] : memref<64x8xf32, #tpu.memory_space<vmem>>, vector<64x8xf32>
    %c0_1 = arith.constant 0 : index
    %c0_2 = arith.constant 0 : index
    %1 = vector.load %arg2[%c0_1, %c0_2] : memref<8x128xf32, #tpu.memory_space<vmem>>, vector<8x128xf32>
    %cst = arith.constant dense<0.000000e+00> : vector<64x128xf32>
    %2 = tpu.matmul %0, %1, %cst {dimension_numbers = #tpu.dot_dimension_numbers<[1], [0], [0], [1], [0, 0, 1, 1], [], []>} : vector<64x8xf32>, vector<8x128xf32>, vector<64x128xf32> -> vector<64x128xf32>
    %c0_3 = arith.constant 0 : index
    %c0_4 = arith.constant 0 : index
    %3 = vector.load %arg3[%c0_3, %c0_4] : memref<32x128xf32, #tpu.memory_space<vmem>>, vector<32x128xf32>
    %cst_5 = arith.constant 0.000000e+00 : f32
    %4 = vector.broadcast %cst_5 : f32 to vector<8x32xf32>
    %cst_6 = arith.constant 0.000000e+00 : f32
    %5 = vector.broadcast %cst_6 : f32 to vector<8x32xf32>
    %6 = vector.extract_strided_slice %2 {offsets = [0, 0], sizes = [8, 128], strides = [1, 1]} : vector<64x128xf32> to vector<8x128xf32>
    %cst_7 = arith.constant dense<0.000000e+00> : vector<8x128xf32>
    %7 = tpu.matmul %4, %3, %cst_7 {dimension_numbers = #tpu.dot_dimension_numbers<[1], [0], [0], [1], [0, 0, 1, 1], [], []>} : vector<8x32xf32>, vector<32x128xf32>, vector<8x128xf32> -> vector<8x128xf32>
    %8 = arith.addf %6, %7 : vector<8x128xf32>
    %9 = arith.negf %8 : vector<8x128xf32>
    %10 = math.exp %9 : vector<8x128xf32>
    %cst_8 = arith.constant 1.000000e+00 : f32
    %11 = vector.broadcast %cst_8 : f32 to vector<8x128xf32>
    %12 = arith.addf %11, %10 : vector<8x128xf32>
    %13 = arith.divf %11, %12 : vector<8x128xf32>
    %14 = math.tanh %8 : vector<8x128xf32>
    %15 = vector.extract_strided_slice %13 {offsets = [0, 0], sizes = [8, 32], strides = [1, 1]} : vector<8x128xf32> to vector<8x32xf32>
    %16 = vector.extract_strided_slice %13 {offsets = [0, 32], sizes = [8, 32], strides = [1, 1]} : vector<8x128xf32> to vector<8x32xf32>
    %17 = vector.extract_strided_slice %14 {offsets = [0, 64], sizes = [8, 32], strides = [1, 1]} : vector<8x128xf32> to vector<8x32xf32>
    %18 = vector.extract_strided_slice %13 {offsets = [0, 96], sizes = [8, 32], strides = [1, 1]} : vector<8x128xf32> to vector<8x32xf32>
    %19 = arith.mulf %16, %5 : vector<8x32xf32>
    %20 = arith.mulf %15, %17 : vector<8x32xf32>
    %21 = arith.addf %19, %20 : vector<8x32xf32>
    %22 = math.tanh %21 : vector<8x32xf32>
    %23 = arith.mulf %18, %22 : vector<8x32xf32>
    %24 = vector.extract_strided_slice %2 {offsets = [8, 0], sizes = [8, 128], strides = [1, 1]} : vector<64x128xf32> to vector<8x128xf32>
    %cst_9 = arith.constant dense<0.000000e+00> : vector<8x128xf32>
    %25 = tpu.matmul %23, %3, %cst_9 {dimension_numbers = #tpu.dot_dimension_numbers<[1], [0], [0], [1], [0, 0, 1, 1], [], []>} : vector<8x32xf32>, vector<32x128xf32>, vector<8x128xf32> -> vector<8x128xf32>
    %26 = arith.addf %24, %25 : vector<8x128xf32>
    %27 = arith.negf %26 : vector<8x128xf32>
    %28 = math.exp %27 : vector<8x128xf32>
    %cst_10 = arith.constant 1.000000e+00 : f32
    %29 = vector.broadcast %cst_10 : f32 to vector<8x128xf32>
    %30 = arith.addf %29, %28 : vector<8x128xf32>
    %31 = arith.divf %29, %30 : vector<8x128xf32>
    %32 = math.tanh %26 : vector<8x128xf32>
    %33 = vector.extract_strided_slice %31 {offsets = [0, 0], sizes = [8, 32], strides = [1, 1]} : vector<8x128xf32> to vector<8x32xf32>
    %34 = vector.extract_strided_slice %31 {offsets = [0, 32], sizes = [8, 32], strides = [1, 1]} : vector<8x128xf32> to vector<8x32xf32>
    %35 = vector.extract_strided_slice %32 {offsets = [0, 64], sizes = [8, 32], strides = [1, 1]} : vector<8x128xf32> to vector<8x32xf32>
    %36 = vector.extract_strided_slice %31 {offsets = [0, 96], sizes = [8, 32], strides = [1, 1]} : vector<8x128xf32> to vector<8x32xf32>
    %37 = arith.mulf %34, %21 : vector<8x32xf32>
    %38 = arith.mulf %33, %35 : vector<8x32xf32>
    %39 = arith.addf %37, %38 : vector<8x32xf32>
    %40 = math.tanh %39 : vector<8x32xf32>
    %41 = arith.mulf %36, %40 : vector<8x32xf32>
    %42 = vector.extract_strided_slice %2 {offsets = [16, 0], sizes = [8, 128], strides = [1, 1]} : vector<64x128xf32> to vector<8x128xf32>
    %cst_11 = arith.constant dense<0.000000e+00> : vector<8x128xf32>
    %43 = tpu.matmul %41, %3, %cst_11 {dimension_numbers = #tpu.dot_dimension_numbers<[1], [0], [0], [1], [0, 0, 1, 1], [], []>} : vector<8x32xf32>, vector<32x128xf32>, vector<8x128xf32> -> vector<8x128xf32>
    %44 = arith.addf %42, %43 : vector<8x128xf32>
    %45 = arith.negf %44 : vector<8x128xf32>
    %46 = math.exp %45 : vector<8x128xf32>
    %cst_12 = arith.constant 1.000000e+00 : f32
    %47 = vector.broadcast %cst_12 : f32 to vector<8x128xf32>
    %48 = arith.addf %47, %46 : vector<8x128xf32>
    %49 = arith.divf %47, %48 : vector<8x128xf32>
    %50 = math.tanh %44 : vector<8x128xf32>
    %51 = vector.extract_strided_slice %49 {offsets = [0, 0], sizes = [8, 32], strides = [1, 1]} : vector<8x128xf32> to vector<8x32xf32>
    %52 = vector.extract_strided_slice %49 {offsets = [0, 32], sizes = [8, 32], strides = [1, 1]} : vector<8x128xf32> to vector<8x32xf32>
    %53 = vector.extract_strided_slice %50 {offsets = [0, 64], sizes = [8, 32], strides = [1, 1]} : vector<8x128xf32> to vector<8x32xf32>
    %54 = vector.extract_strided_slice %49 {offsets = [0, 96], sizes = [8, 32], strides = [1, 1]} : vector<8x128xf32> to vector<8x32xf32>
    %55 = arith.mulf %52, %39 : vector<8x32xf32>
    %56 = arith.mulf %51, %53 : vector<8x32xf32>
    %57 = arith.addf %55, %56 : vector<8x32xf32>
    %58 = math.tanh %57 : vector<8x32xf32>
    %59 = arith.mulf %54, %58 : vector<8x32xf32>
    %60 = vector.extract_strided_slice %2 {offsets = [24, 0], sizes = [8, 128], strides = [1, 1]} : vector<64x128xf32> to vector<8x128xf32>
    %cst_13 = arith.constant dense<0.000000e+00> : vector<8x128xf32>
    %61 = tpu.matmul %59, %3, %cst_13 {dimension_numbers = #tpu.dot_dimension_numbers<[1], [0], [0], [1], [0, 0, 1, 1], [], []>} : vector<8x32xf32>, vector<32x128xf32>, vector<8x128xf32> -> vector<8x128xf32>
    %62 = arith.addf %60, %61 : vector<8x128xf32>
    %63 = arith.negf %62 : vector<8x128xf32>
    %64 = math.exp %63 : vector<8x128xf32>
    %cst_14 = arith.constant 1.000000e+00 : f32
    %65 = vector.broadcast %cst_14 : f32 to vector<8x128xf32>
    %66 = arith.addf %65, %64 : vector<8x128xf32>
    %67 = arith.divf %65, %66 : vector<8x128xf32>
    %68 = math.tanh %62 : vector<8x128xf32>
    %69 = vector.extract_strided_slice %67 {offsets = [0, 0], sizes = [8, 32], strides = [1, 1]} : vector<8x128xf32> to vector<8x32xf32>
    %70 = vector.extract_strided_slice %67 {offsets = [0, 32], sizes = [8, 32], strides = [1, 1]} : vector<8x128xf32> to vector<8x32xf32>
    %71 = vector.extract_strided_slice %68 {offsets = [0, 64], sizes = [8, 32], strides = [1, 1]} : vector<8x128xf32> to vector<8x32xf32>
    %72 = vector.extract_strided_slice %67 {offsets = [0, 96], sizes = [8, 32], strides = [1, 1]} : vector<8x128xf32> to vector<8x32xf32>
    %73 = arith.mulf %70, %57 : vector<8x32xf32>
    %74 = arith.mulf %69, %71 : vector<8x32xf32>
    %75 = arith.addf %73, %74 : vector<8x32xf32>
    %76 = math.tanh %75 : vector<8x32xf32>
    %77 = arith.mulf %72, %76 : vector<8x32xf32>
    %78 = vector.extract_strided_slice %2 {offsets = [32, 0], sizes = [8, 128], strides = [1, 1]} : vector<64x128xf32> to vector<8x128xf32>
    %cst_15 = arith.constant dense<0.000000e+00> : vector<8x128xf32>
    %79 = tpu.matmul %77, %3, %cst_15 {dimension_numbers = #tpu.dot_dimension_numbers<[1], [0], [0], [1], [0, 0, 1, 1], [], []>} : vector<8x32xf32>, vector<32x128xf32>, vector<8x128xf32> -> vector<8x128xf32>
    %80 = arith.addf %78, %79 : vector<8x128xf32>
    %81 = arith.negf %80 : vector<8x128xf32>
    %82 = math.exp %81 : vector<8x128xf32>
    %cst_16 = arith.constant 1.000000e+00 : f32
    %83 = vector.broadcast %cst_16 : f32 to vector<8x128xf32>
    %84 = arith.addf %83, %82 : vector<8x128xf32>
    %85 = arith.divf %83, %84 : vector<8x128xf32>
    %86 = math.tanh %80 : vector<8x128xf32>
    %87 = vector.extract_strided_slice %85 {offsets = [0, 0], sizes = [8, 32], strides = [1, 1]} : vector<8x128xf32> to vector<8x32xf32>
    %88 = vector.extract_strided_slice %85 {offsets = [0, 32], sizes = [8, 32], strides = [1, 1]} : vector<8x128xf32> to vector<8x32xf32>
    %89 = vector.extract_strided_slice %86 {offsets = [0, 64], sizes = [8, 32], strides = [1, 1]} : vector<8x128xf32> to vector<8x32xf32>
    %90 = vector.extract_strided_slice %85 {offsets = [0, 96], sizes = [8, 32], strides = [1, 1]} : vector<8x128xf32> to vector<8x32xf32>
    %91 = arith.mulf %88, %75 : vector<8x32xf32>
    %92 = arith.mulf %87, %89 : vector<8x32xf32>
    %93 = arith.addf %91, %92 : vector<8x32xf32>
    %94 = math.tanh %93 : vector<8x32xf32>
    %95 = arith.mulf %90, %94 : vector<8x32xf32>
    %96 = vector.extract_strided_slice %2 {offsets = [40, 0], sizes = [8, 128], strides = [1, 1]} : vector<64x128xf32> to vector<8x128xf32>
    %cst_17 = arith.constant dense<0.000000e+00> : vector<8x128xf32>
    %97 = tpu.matmul %95, %3, %cst_17 {dimension_numbers = #tpu.dot_dimension_numbers<[1], [0], [0], [1], [0, 0, 1, 1], [], []>} : vector<8x32xf32>, vector<32x128xf32>, vector<8x128xf32> -> vector<8x128xf32>
    %98 = arith.addf %96, %97 : vector<8x128xf32>
    %99 = arith.negf %98 : vector<8x128xf32>
    %100 = math.exp %99 : vector<8x128xf32>
    %cst_18 = arith.constant 1.000000e+00 : f32
    %101 = vector.broadcast %cst_18 : f32 to vector<8x128xf32>
    %102 = arith.addf %101, %100 : vector<8x128xf32>
    %103 = arith.divf %101, %102 : vector<8x128xf32>
    %104 = math.tanh %98 : vector<8x128xf32>
    %105 = vector.extract_strided_slice %103 {offsets = [0, 0], sizes = [8, 32], strides = [1, 1]} : vector<8x128xf32> to vector<8x32xf32>
    %106 = vector.extract_strided_slice %103 {offsets = [0, 32], sizes = [8, 32], strides = [1, 1]} : vector<8x128xf32> to vector<8x32xf32>
    %107 = vector.extract_strided_slice %104 {offsets = [0, 64], sizes = [8, 32], strides = [1, 1]} : vector<8x128xf32> to vector<8x32xf32>
    %108 = vector.extract_strided_slice %103 {offsets = [0, 96], sizes = [8, 32], strides = [1, 1]} : vector<8x128xf32> to vector<8x32xf32>
    %109 = arith.mulf %106, %93 : vector<8x32xf32>
    %110 = arith.mulf %105, %107 : vector<8x32xf32>
    %111 = arith.addf %109, %110 : vector<8x32xf32>
    %112 = math.tanh %111 : vector<8x32xf32>
    %113 = arith.mulf %108, %112 : vector<8x32xf32>
    %114 = vector.extract_strided_slice %2 {offsets = [48, 0], sizes = [8, 128], strides = [1, 1]} : vector<64x128xf32> to vector<8x128xf32>
    %cst_19 = arith.constant dense<0.000000e+00> : vector<8x128xf32>
    %115 = tpu.matmul %113, %3, %cst_19 {dimension_numbers = #tpu.dot_dimension_numbers<[1], [0], [0], [1], [0, 0, 1, 1], [], []>} : vector<8x32xf32>, vector<32x128xf32>, vector<8x128xf32> -> vector<8x128xf32>
    %116 = arith.addf %114, %115 : vector<8x128xf32>
    %117 = arith.negf %116 : vector<8x128xf32>
    %118 = math.exp %117 : vector<8x128xf32>
    %cst_20 = arith.constant 1.000000e+00 : f32
    %119 = vector.broadcast %cst_20 : f32 to vector<8x128xf32>
    %120 = arith.addf %119, %118 : vector<8x128xf32>
    %121 = arith.divf %119, %120 : vector<8x128xf32>
    %122 = math.tanh %116 : vector<8x128xf32>
    %123 = vector.extract_strided_slice %121 {offsets = [0, 0], sizes = [8, 32], strides = [1, 1]} : vector<8x128xf32> to vector<8x32xf32>
    %124 = vector.extract_strided_slice %121 {offsets = [0, 32], sizes = [8, 32], strides = [1, 1]} : vector<8x128xf32> to vector<8x32xf32>
    %125 = vector.extract_strided_slice %122 {offsets = [0, 64], sizes = [8, 32], strides = [1, 1]} : vector<8x128xf32> to vector<8x32xf32>
    %126 = vector.extract_strided_slice %121 {offsets = [0, 96], sizes = [8, 32], strides = [1, 1]} : vector<8x128xf32> to vector<8x32xf32>
    %127 = arith.mulf %124, %111 : vector<8x32xf32>
    %128 = arith.mulf %123, %125 : vector<8x32xf32>
    %129 = arith.addf %127, %128 : vector<8x32xf32>
    %130 = math.tanh %129 : vector<8x32xf32>
    %131 = arith.mulf %126, %130 : vector<8x32xf32>
    %132 = vector.extract_strided_slice %2 {offsets = [56, 0], sizes = [8, 128], strides = [1, 1]} : vector<64x128xf32> to vector<8x128xf32>
    %cst_21 = arith.constant dense<0.000000e+00> : vector<8x128xf32>
    %133 = tpu.matmul %131, %3, %cst_21 {dimension_numbers = #tpu.dot_dimension_numbers<[1], [0], [0], [1], [0, 0, 1, 1], [], []>} : vector<8x32xf32>, vector<32x128xf32>, vector<8x128xf32> -> vector<8x128xf32>
    %134 = arith.addf %132, %133 : vector<8x128xf32>
    %135 = arith.negf %134 : vector<8x128xf32>
    %136 = math.exp %135 : vector<8x128xf32>
    %cst_22 = arith.constant 1.000000e+00 : f32
    %137 = vector.broadcast %cst_22 : f32 to vector<8x128xf32>
    %138 = arith.addf %137, %136 : vector<8x128xf32>
    %139 = arith.divf %137, %138 : vector<8x128xf32>
    %140 = math.tanh %134 : vector<8x128xf32>
    %141 = vector.extract_strided_slice %139 {offsets = [0, 0], sizes = [8, 32], strides = [1, 1]} : vector<8x128xf32> to vector<8x32xf32>
    %142 = vector.extract_strided_slice %139 {offsets = [0, 32], sizes = [8, 32], strides = [1, 1]} : vector<8x128xf32> to vector<8x32xf32>
    %143 = vector.extract_strided_slice %140 {offsets = [0, 64], sizes = [8, 32], strides = [1, 1]} : vector<8x128xf32> to vector<8x32xf32>
    %144 = vector.extract_strided_slice %139 {offsets = [0, 96], sizes = [8, 32], strides = [1, 1]} : vector<8x128xf32> to vector<8x32xf32>
    %145 = arith.mulf %142, %129 : vector<8x32xf32>
    %146 = arith.mulf %141, %143 : vector<8x32xf32>
    %147 = arith.addf %145, %146 : vector<8x32xf32>
    %148 = math.tanh %147 : vector<8x32xf32>
    %149 = arith.mulf %144, %148 : vector<8x32xf32>
    %c0_23 = arith.constant 0 : index
    %c0_24 = arith.constant 0 : index
    %150 = vector.load %arg4[%c0_23, %c0_24] : memref<8x32xf32, #tpu.memory_space<vmem>>, vector<8x32xf32>
    tpu.vector_store %arg4[%c0_23, %c0_24], %149 {strides = array<i32>} : memref<8x32xf32, #tpu.memory_space<vmem>>, vector<8x32xf32>,
    return
  }
  func.func @transform_0(%arg0: i32) -> (i32, i32) {
    %c0_i32 = arith.constant 0 : i32
    %c0_i32_0 = arith.constant 0 : i32
    %c0_i32_1 = arith.constant 0 : i32
    return %c0_i32, %c0_i32_0 : i32, i32
  }
  func.func @transform_1(%arg0: i32) -> (i32, i32) {
    %c0_i32 = arith.constant 0 : i32
    %c0_i32_0 = arith.constant 0 : i32
    %c0_i32_1 = arith.constant 0 : i32
    return %c0_i32, %c0_i32_0 : i32, i32
  }
  func.func @transform_2(%arg0: i32) -> (i32, i32) {
    %c0_i32 = arith.constant 0 : i32
    %c0_i32_0 = arith.constant 0 : i32
    %c0_i32_1 = arith.constant 0 : i32
    return %c0_i32, %c0_i32_0 : i32, i32
  }
  func.func @transform_3(%arg0: i32) -> (i32, i32) {
    %c0_i32 = arith.constant 0 : i32
    %c0_i32_0 = arith.constant 0 : i32
    %c0_i32_1 = arith.constant 0 : i32
    return %c0_i32, %c0_i32_0 : i32, i32
  }
}

</mosaic_0001>

<llo_original>
// kernel: tpu_custom_call.1
$region0: #{tpu_custom_call.1}
  #allocation0 [shape = 'u32[]', space=smem, size = 0x4, offset = 0x4, fixed_abs, tag = 'smem constant byte address 0x4 - core index']
  #allocation1 [shape = 'u32[144,128]{1,0:T(1,128)}', space=vmem, size = 0x12000, scoped, tag = 'internal scratch']
  %s0 = inlined_call_operand.vmem [shape: f32[64,8], index: 0, kind: input, shape index: {}]
  %s1 = inlined_call_operand.vmem [shape: f32[8,128], index: 1, kind: input, shape index: {}]
  %s2 = inlined_call_operand.vmem [shape: f32[32,128], index: 2, kind: input, shape index: {}]
  %s3 = inlined_call_operand.hbm [shape: f32[8,32], index: 3, kind: output, shape index: {}]
  %s4 = sld [smem:[#allocation0]]
  $region22: #{tpu_custom_call.1} parent=0
    _
  %s6 = ssub.s32 1, %s4
  %s7 = scalar_select 0, %s6, %s4
  $region1: #{tpu_custom_call.1} parent=0
    #allocation2 [shape = 'u8[4096]{0}', space=vmem, size = 0x1000, scoped, tag = 'output window, operand 0, single buffered']
    #allocation3 [shape = 's32[1]{0}', space=sflag, size = 0x4, scoped, tag = 'scoped memory for tpu_custom_call.1']
    %8 = vsyncpa [#allocation3], 0
    // Predicated region
    $region2: #{tpu_custom_call.1} parent=1 // pred_check
      _
    $region3: #{tpu_custom_call.1} parent=1 // pred_check_branch
      %10 = sbr.rel (0) target = $region5
    $region4: #{tpu_custom_call.1} parent=1 // pred_region
      _
    $region5: #{tpu_custom_call.1} parent=1 // pred_fallthru
      _
    // Predicated region
    $region6: #{tpu_custom_call.1} parent=1 // pred_check
      _
    $region7: #{tpu_custom_call.1} parent=1 // pred_check_branch
      %12 = sbr.rel (0) target = $region9
    $region8: #{tpu_custom_call.1} parent=1 // pred_region
      _
    $region9: #{tpu_custom_call.1} parent=1 // pred_fallthru
      _
    // Predicated region
    $region10: #{tpu_custom_call.1} parent=1 // pred_check
      _
    $region11: #{tpu_custom_call.1} parent=1 // pred_check_branch
      %14 = sbr.rel (0) target = $region13
    $region12: #{tpu_custom_call.1} parent=1 // pred_region
      _
    $region13: #{tpu_custom_call.1} parent=1 // pred_fallthru
      _
    %v15 = vld [vmem:[%s0] sm:$0xff]
    %v16 = vld [vmem:[%s0 + $0x8] sm:$0xff]
    %v17 = vld [vmem:[%s0 + $0x10] sm:$0xff]
    %v18 = vld [vmem:[%s0 + $0x18] sm:$0xff]
    %v19 = vld [vmem:[%s0 + $0x20] sm:$0xff]
    %v20 = vld [vmem:[%s0 + $0x28] sm:$0xff]
    %v21 = vld [vmem:[%s0 + $0x30] sm:$0xff]
    %v22 = vld [vmem:[%s0 + $0x38] sm:$0xff]
    %v23 = vld [vmem:[%s1] sm:$0xff]
    %vm24 = vcmask 64512
    %v26 = vsel %vm24, %v15, 0
    %v29 = vsel %vm24, %v16, 0
    %v32 = vsel %vm24, %v17, 0
    %v35 = vsel %vm24, %v18, 0
    %v38 = vsel %vm24, %v19, 0
    %v41 = vsel %vm24, %v20, 0
    %v44 = vsel %vm24, %v21, 0
    %v47 = vsel %vm24, %v22, 0
    %49 = vmatprep.subr.mxu0 0.0
    %50 = vmatpush1.msra.mxu0 0.0
    %51 = vmatprep.subr.mxu0 0.0
    %52 = vmatpush1.msra.mxu0 0.0
    %53 = vmatprep.subr.mxu0 0.0
    %54 = vmatpush1.msra.mxu0 0.0
    %55 = vmatprep.subr.mxu0 0.0
    %56 = vmatpush1.msra.mxu0 0.0
    %57 = vmatprep.subr.mxu0 0.0
    %58 = vmatpush1.msra.mxu0 0.0
    %59 = vmatprep.subr.mxu0 0.0
    %60 = vmatpush1.msra.mxu0 0.0
    %61 = vmatprep.subr.mxu0 0.0
    %62 = vmatpush1.msra.mxu0 0.0
    %63 = vmatprep.subr.mxu0 0.0
    %64 = vmatpush1.msra.mxu0 0.0
    %65 = vmatprep.subr.mxu0 0.0
    %66 = vmatpush1.msra.mxu0 0.0
    %67 = vmatprep.subr.mxu0 0.0
    %68 = vmatpush1.msra.mxu0 0.0
    %69 = vmatprep.subr.mxu0 0.0
    %70 = vmatpush1.msra.mxu0 0.0
    %71 = vmatprep.subr.mxu0 0.0
    %72 = vmatpush1.msra.mxu0 0.0
    %73 = vmatprep.subr.mxu0 0.0
    %74 = vmatpush1.msra.mxu0 0.0
    %75 = vmatprep.subr.mxu0 0.0
    %76 = vmatpush1.msra.mxu0 0.0
    %77 = vmatprep.subr.mxu0 0.0
    %78 = vmatpush1.msra.mxu0 0.0
    %79 = vmatprep.subr.mxu0 0.0
    %80 = vmatpush1.msra.mxu0 %v23
    %81 = vmatprep.subr.mxu0 0.0
    %82 = vmatpush2.msra.mxu0 0.0
    %83 = vmatprep.subr.mxu0 0.0
    %84 = vmatpush2.msra.mxu0 0.0
    %85 = vmatprep.subr.mxu0 0.0
    %86 = vmatpush2.msra.mxu0 0.0
    %87 = vmatprep.subr.mxu0 0.0
    %88 = vmatpush2.msra.mxu0 0.0
    %89 = vmatprep.subr.mxu0 0.0
    %90 = vmatpush2.msra.mxu0 0.0
    %91 = vmatprep.subr.mxu0 0.0
    %92 = vmatpush2.msra.mxu0 0.0
    %93 = vmatprep.subr.mxu0 0.0
    %94 = vmatpush2.msra.mxu0 0.0
    %95 = vmatprep.subr.mxu0 0.0
    %96 = vmatpush2.msra.mxu0 0.0
    %97 = vmatprep.subr.mxu0 0.0
    %98 = vmatpush2.msra.mxu0 0.0
    %99 = vmatprep.subr.mxu0 0.0
    %100 = vmatpush2.msra.mxu0 0.0
    %101 = vmatprep.subr.mxu0 0.0
    %102 = vmatpush2.msra.mxu0 0.0
    %103 = vmatprep.subr.mxu0 0.0
    %104 = vmatpush2.msra.mxu0 0.0
    %105 = vmatprep.subr.mxu0 0.0
    %106 = vmatpush2.msra.mxu0 0.0
    %107 = vmatprep.subr.mxu0 0.0
    %108 = vmatpush2.msra.mxu0 0.0
    %109 = vmatprep.subr.mxu0 0.0
    %110 = vmatpush2.msra.mxu0 0.0
    %111 = vmatprep.subr.mxu0 0.0
    %112 = vmatpush2.msra.mxu0 0.0
    %113 = vmatprep.mubr.f32.mxu0 0.0
    %114 = vmatmul.mubr.f32.gmra.mxu0 %v26
    %v115 = vpop.f32.mrf.mxu0
    %v116 = vadd.f32 0.0, %v115
    %v117 = vpop.f32.mrf.mxu0
    %118 = vmatprep.mubr.f32.mxu0 0.0
    %119 = vmatmul.mubr.f32.gmra.mxu0 %v29
    %v120 = vpop.f32.mrf.mxu0
    %v121 = vadd.f32 0.0, %v120
    %v122 = vpop.f32.mrf.mxu0
    %123 = vmatprep.mubr.f32.mxu0 0.0
    %124 = vmatmul.mubr.f32.gmra.mxu0 %v32
    %v125 = vpop.f32.mrf.mxu0
    %v126 = vadd.f32 0.0, %v125
    %v127 = vpop.f32.mrf.mxu0
    %128 = vmatprep.mubr.f32.mxu0 0.0
    %129 = vmatmul.mubr.f32.gmra.mxu0 %v35
    %v130 = vpop.f32.mrf.mxu0
    %v131 = vadd.f32 0.0, %v130
    %v132 = vpop.f32.mrf.mxu0
    %133 = vmatprep.mubr.f32.mxu0 0.0
    %134 = vmatmul.mubr.f32.gmra.mxu0 %v38
    %v135 = vpop.f32.mrf.mxu0
    %v136 = vadd.f32 0.0, %v135
    %v137 = vpop.f32.mrf.mxu0
    %138 = vmatprep.mubr.f32.mxu0 0.0
    %139 = vmatmul.mubr.f32.gmra.mxu0 %v41
    %v140 = vpop.f32.mrf.mxu0
    %v141 = vadd.f32 0.0, %v140
    %v142 = vpop.f32.mrf.mxu0
    %143 = vmatprep.mubr.f32.mxu0 0.0
    %144 = vmatmul.mubr.f32.gmra.mxu0 %v44
    %v145 = vpop.f32.mrf.mxu0
    %v146 = vadd.f32 0.0, %v145
    %v147 = vpop.f32.mrf.mxu0
    %148 = vmatprep.mubr.f32.mxu0 0.0
    %149 = vmatmul.mubr.f32.gmra.mxu0 %v47
    %v150 = vpop.f32.mrf.mxu0
    %v151 = vadd.f32 0.0, %v150
    %v152 = vpop.f32.mrf.mxu0
    %153 = vdwg.mxu0
    %v154 = vld [vmem:[%s2] sm:$0xff]
    %v155 = vld [vmem:[%s2 + $0x8] sm:$0xff]
    %v156 = vld [vmem:[%s2 + $0x10] sm:$0xff]
    %v157 = vld [vmem:[%s2 + $0x18] sm:$0xff]
    %vm158 = vcmask 261120
    %v160 = vsel %vm158, 0.0, 0
    %162 = vmatprep.subr.mxu0 0.0
    %163 = vmatpush1.msra.mxu0 0.0
    %164 = vmatprep.subr.mxu0 0.0
    %165 = vmatpush1.msra.mxu0 0.0
    %166 = vmatprep.subr.mxu0 0.0
    %167 = vmatpush1.msra.mxu0 0.0
    %168 = vmatprep.subr.mxu0 0.0
    %169 = vmatpush1.msra.mxu0 0.0
    %170 = vmatprep.subr.mxu0 0.0
    %171 = vmatpush1.msra.mxu0 0.0
    %172 = vmatprep.subr.mxu0 0.0
    %173 = vmatpush1.msra.mxu0 0.0
    %174 = vmatprep.subr.mxu0 0.0
    %175 = vmatpush1.msra.mxu0 0.0
    %176 = vmatprep.subr.mxu0 0.0
    %177 = vmatpush1.msra.mxu0 0.0
    %178 = vmatprep.subr.mxu0 0.0
    %179 = vmatpush1.msra.mxu0 0.0
    %180 = vmatprep.subr.mxu0 0.0
    %181 = vmatpush1.msra.mxu0 0.0
    %182 = vmatprep.subr.mxu0 0.0
    %183 = vmatpush1.msra.mxu0 0.0
    %184 = vmatprep.subr.mxu0 0.0
    %185 = vmatpush1.msra.mxu0 0.0
    %186 = vmatprep.subr.mxu0 0.0
    %187 = vmatpush1.msra.mxu0 %v157
    %188 = vmatprep.subr.mxu0 0.0
    %189 = vmatpush1.msra.mxu0 %v156
    %190 = vmatprep.subr.mxu0 0.0
    %191 = vmatpush1.msra.mxu0 %v155
    %192 = vmatprep.subr.mxu0 0.0
    %193 = vmatpush1.msra.mxu0 %v154
    %194 = vmatprep.subr.mxu0 0.0
    %195 = vmatpush2.msra.mxu0 0.0
    %196 = vmatprep.subr.mxu0 0.0
    %197 = vmatpush2.msra.mxu0 0.0
    %198 = vmatprep.subr.mxu0 0.0
    %199 = vmatpush2.msra.mxu0 0.0
    %200 = vmatprep.subr.mxu0 0.0
    %201 = vmatpush2.msra.mxu0 0.0
    %202 = vmatprep.subr.mxu0 0.0
    %203 = vmatpush2.msra.mxu0 0.0
    %204 = vmatprep.subr.mxu0 0.0
    %205 = vmatpush2.msra.mxu0 0.0
    %206 = vmatprep.subr.mxu0 0.0
    %207 = vmatpush2.msra.mxu0 0.0
    %208 = vmatprep.subr.mxu0 0.0
    %209 = vmatpush2.msra.mxu0 0.0
    %210 = vmatprep.subr.mxu0 0.0
    %211 = vmatpush2.msra.mxu0 0.0
    %212 = vmatprep.subr.mxu0 0.0
    %213 = vmatpush2.msra.mxu0 0.0
    %214 = vmatprep.subr.mxu0 0.0
    %215 = vmatpush2.msra.mxu0 0.0
    %216 = vmatprep.subr.mxu0 0.0
    %217 = vmatpush2.msra.mxu0 0.0
    %218 = vmatprep.subr.mxu0 0.0
    %219 = vmatpush2.msra.mxu0 0.0
    %220 = vmatprep.subr.mxu0 0.0
    %221 = vmatpush2.msra.mxu0 0.0
    %222 = vmatprep.subr.mxu0 0.0
    %223 = vmatpush2.msra.mxu0 0.0
    %224 = vmatprep.subr.mxu0 0.0
    %225 = vmatpush2.msra.mxu0 0.0
    %226 = vmatprep.mubr.f32.mxu0 0.0
    %227 = vmatmul.mubr.f32.gmra.mxu0 %v160
    %v228 = vpop.f32.mrf.mxu0
    %v229 = vadd.f32 0.0, %v228
    %v230 = vpop.f32.mrf.mxu0
    %231 = vdwg.mxu0
    %v232 = vadd.f32 %v116, %v229
    %v233 = vxor.u32 %v232, 2147483648
    %v234 = vmul.f32 %v233, 1.442695
    %v235 = vpow.pop %v234
    %v236 = vadd.f32 %v235, 1.0
    %v237 = vrcp.pop %v236
    %v238 = vmul.f32 1.0, %v237
    %v239 = vtanh.pop %v232
    %v240 = vmul.f32 %v238, 0.0
    %242 = vrot.lane.b32.xlu0 %v239, 64
    %v243 = vpop.permute.xlu0 %242
    %v245 = vmul.f32 %v238, %v243
    %247 = vrot.lane.b32.xlu0 %v245, 32
    %v248 = vpop.permute.xlu0 %247
    %v250 = vadd.f32 %v240, %v248
    %v251 = vtanh.pop %v250
    %253 = vrot.lane.b32.xlu0 %v251, 64
    %v254 = vpop.permute.xlu0 %253
    %v256 = vmul.f32 %v238, %v254
    %258 = vrot.lane.b32.xlu0 %v256, 32
    %v259 = vpop.permute.xlu0 %258
    %v260 = vsel %vm158, %v259, 0
    %262 = vmatprep.subr.mxu0 0.0
    %263 = vmatpush1.msra.mxu0 0.0
    %264 = vmatprep.subr.mxu0 0.0
    %265 = vmatpush1.msra.mxu0 0.0
    %266 = vmatprep.subr.mxu0 0.0
    %267 = vmatpush1.msra.mxu0 0.0
    %268 = vmatprep.subr.mxu0 0.0
    %269 = vmatpush1.msra.mxu0 0.0
    %270 = vmatprep.subr.mxu0 0.0
    %271 = vmatpush1.msra.mxu0 0.0
    %272 = vmatprep.subr.mxu0 0.0
    %273 = vmatpush1.msra.mxu0 0.0
    %274 = vmatprep.subr.mxu0 0.0
    %275 = vmatpush1.msra.mxu0 0.0
    %276 = vmatprep.subr.mxu0 0.0
    %277 = vmatpush1.msra.mxu0 0.0
    %278 = vmatprep.subr.mxu0 0.0
    %279 = vmatpush1.msra.mxu0 0.0
    %280 = vmatprep.subr.mxu0 0.0
    %281 = vmatpush1.msra.mxu0 0.0
    %282 = vmatprep.subr.mxu0 0.0
    %283 = vmatpush1.msra.mxu0 0.0
    %284 = vmatprep.subr.mxu0 0.0
    %285 = vmatpush1.msra.mxu0 0.0
    %286 = vmatprep.subr.mxu0 0.0
    %287 = vmatpush1.msra.mxu0 %v157
    %288 = vmatprep.subr.mxu0 0.0
    %289 = vmatpush1.msra.mxu0 %v156
    %290 = vmatprep.subr.mxu0 0.0
    %291 = vmatpush1.msra.mxu0 %v155
    %292 = vmatprep.subr.mxu0 0.0
    %293 = vmatpush1.msra.mxu0 %v154
    %294 = vmatprep.subr.mxu0 0.0
    %295 = vmatpush2.msra.mxu0 0.0
    %296 = vmatprep.subr.mxu0 0.0
    %297 = vmatpush2.msra.mxu0 0.0
    %298 = vmatprep.subr.mxu0 0.0
    %299 = vmatpush2.msra.mxu0 0.0
    %300 = vmatprep.subr.mxu0 0.0
    %301 = vmatpush2.msra.mxu0 0.0
    %302 = vmatprep.subr.mxu0 0.0
    %303 = vmatpush2.msra.mxu0 0.0
    %304 = vmatprep.subr.mxu0 0.0
    %305 = vmatpush2.msra.mxu0 0.0
    %306 = vmatprep.subr.mxu0 0.0
    %307 = vmatpush2.msra.mxu0 0.0
    %308 = vmatprep.subr.mxu0 0.0
    %309 = vmatpush2.msra.mxu0 0.0
    %310 = vmatprep.subr.mxu0 0.0
    %311 = vmatpush2.msra.mxu0 0.0
    %312 = vmatprep.subr.mxu0 0.0
    %313 = vmatpush2.msra.mxu0 0.0
    %314 = vmatprep.subr.mxu0 0.0
    %315 = vmatpush2.msra.mxu0 0.0
    %316 = vmatprep.subr.mxu0 0.0
    %317 = vmatpush2.msra.mxu0 0.0
    %318 = vmatprep.subr.mxu0 0.0
    %319 = vmatpush2.msra.mxu0 0.0
    %320 = vmatprep.subr.mxu0 0.0
    %321 = vmatpush2.msra.mxu0 0.0
    %322 = vmatprep.subr.mxu0 0.0
    %323 = vmatpush2.msra.mxu0 0.0
    %324 = vmatprep.subr.mxu0 0.0
    %325 = vmatpush2.msra.mxu0 0.0
    %326 = vmatprep.mubr.f32.mxu0 0.0
    %327 = vmatmul.mubr.f32.gmra.mxu0 %v260
    %v328 = vpop.f32.mrf.mxu0
    %v329 = vadd.f32 0.0, %v328
    %v330 = vpop.f32.mrf.mxu0
    %331 = vdwg.mxu0
    %v332 = vadd.f32 %v121, %v329
    %v333 = vxor.u32 %v332, 2147483648
    %v334 = vmul.f32 %v333, 1.442695
    %v335 = vpow.pop %v334
    %v336 = vadd.f32 %v335, 1.0
    %v337 = vrcp.pop %v336
    %v338 = vmul.f32 1.0, %v337
    %v339 = vtanh.pop %v332
    %v340 = vmul.f32 %v338, %v250
    %342 = vrot.lane.b32.xlu0 %v339, 64
    %v343 = vpop.permute.xlu0 %342
    %v345 = vmul.f32 %v338, %v343
    %347 = vrot.lane.b32.xlu0 %v345, 32
    %v348 = vpop.permute.xlu0 %347
    %v350 = vadd.f32 %v340, %v348
    %v351 = vtanh.pop %v350
    %353 = vrot.lane.b32.xlu0 %v351, 64
    %v354 = vpop.permute.xlu0 %353
    %v356 = vmul.f32 %v338, %v354
    %358 = vrot.lane.b32.xlu0 %v356, 32
    %v359 = vpop.permute.xlu0 %358
    %v360 = vsel %vm158, %v359, 0
    %362 = vmatprep.subr.mxu0 0.0
    %363 = vmatpush1.msra.mxu0 0.0
    %364 = vmatprep.subr.mxu0 0.0
    %365 = vmatpush1.msra.mxu0 0.0
    %366 = vmatprep.subr.mxu0 0.0
    %367 = vmatpush1.msra.mxu0 0.0
    %368 = vmatprep.subr.mxu0 0.0
    %369 = vmatpush1.msra.mxu0 0.0
    %370 = vmatprep.subr.mxu0 0.0
    %371 = vmatpush1.msra.mxu0 0.0
    %372 = vmatprep.subr.mxu0 0.0
    %373 = vmatpush1.msra.mxu0 0.0
    %374 = vmatprep.subr.mxu0 0.0
    %375 = vmatpush1.msra.mxu0 0.0
    %376 = vmatprep.subr.mxu0 0.0
    %377 = vmatpush1.msra.mxu0 0.0
    %378 = vmatprep.subr.mxu0 0.0
    %379 = vmatpush1.msra.mxu0 0.0
    %380 = vmatprep.subr.mxu0 0.0
    %381 = vmatpush1.msra.mxu0 0.0
    %382 = vmatprep.subr.mxu0 0.0
    %383 = vmatpush1.msra.mxu0 0.0
    %384 = vmatprep.subr.mxu0 0.0
    %385 = vmatpush1.msra.mxu0 0.0
    %386 = vmatprep.subr.mxu0 0.0
    %387 = vmatpush1.msra.mxu0 %v157
    %388 = vmatprep.subr.mxu0 0.0
    %389 = vmatpush1.msra.mxu0 %v156
    %390 = vmatprep.subr.mxu0 0.0
    %391 = vmatpush1.msra.mxu0 %v155
    %392 = vmatprep.subr.mxu0 0.0
    %393 = vmatpush1.msra.mxu0 %v154
    %394 = vmatprep.subr.mxu0 0.0
    %395 = vmatpush2.msra.mxu0 0.0
    %396 = vmatprep.subr.mxu0 0.0
    %397 = vmatpush2.msra.mxu0 0.0
    %398 = vmatprep.subr.mxu0 0.0
    %399 = vmatpush2.msra.mxu0 0.0
    %400 = vmatprep.subr.mxu0 0.0
    %401 = vmatpush2.msra.mxu0 0.0
    %402 = vmatprep.subr.mxu0 0.0
    %403 = vmatpush2.msra.mxu0 0.0
    %404 = vmatprep.subr.mxu0 0.0
    %405 = vmatpush2.msra.mxu0 0.0
    %406 = vmatprep.subr.mxu0 0.0
    %407 = vmatpush2.msra.mxu0 0.0
    %408 = vmatprep.subr.mxu0 0.0
    %409 = vmatpush2.msra.mxu0 0.0
    %410 = vmatprep.subr.mxu0 0.0
    %411 = vmatpush2.msra.mxu0 0.0
    %412 = vmatprep.subr.mxu0 0.0
    %413 = vmatpush2.msra.mxu0 0.0
    %414 = vmatprep.subr.mxu0 0.0
    %415 = vmatpush2.msra.mxu0 0.0
    %416 = vmatprep.subr.mxu0 0.0
    %417 = vmatpush2.msra.mxu0 0.0
    %418 = vmatprep.subr.mxu0 0.0
    %419 = vmatpush2.msra.mxu0 0.0
    %420 = vmatprep.subr.mxu0 0.0
    %421 = vmatpush2.msra.mxu0 0.0
    %422 = vmatprep.subr.mxu0 0.0
    %423 = vmatpush2.msra.mxu0 0.0
    %424 = vmatprep.subr.mxu0 0.0
    %425 = vmatpush2.msra.mxu0 0.0
    %426 = vmatprep.mubr.f32.mxu0 0.0
    %427 = vmatmul.mubr.f32.gmra.mxu0 %v360
    %v428 = vpop.f32.mrf.mxu0
    %v429 = vadd.f32 0.0, %v428
    %v430 = vpop.f32.mrf.mxu0
    %431 = vdwg.mxu0
    %v432 = vadd.f32 %v126, %v429
    %v433 = vxor.u32 %v432, 2147483648
    %v434 = vmul.f32 %v433, 1.442695
    %v435 = vpow.pop %v434
    %v436 = vadd.f32 %v435, 1.0
    %v437 = vrcp.pop %v436
    %v438 = vmul.f32 1.0, %v437
    %v439 = vtanh.pop %v432
    %v440 = vmul.f32 %v438, %v350
    %442 = vrot.lane.b32.xlu0 %v439, 64
    %v443 = vpop.permute.xlu0 %442
    %v445 = vmul.f32 %v438, %v443
    %447 = vrot.lane.b32.xlu0 %v445, 32
    %v448 = vpop.permute.xlu0 %447
    %v450 = vadd.f32 %v440, %v448
    %v451 = vtanh.pop %v450
    %453 = vrot.lane.b32.xlu0 %v451, 64
    %v454 = vpop.permute.xlu0 %453
    %v456 = vmul.f32 %v438, %v454
    %458 = vrot.lane.b32.xlu0 %v456, 32
    %v459 = vpop.permute.xlu0 %458
    %v460 = vsel %vm158, %v459, 0
    %462 = vmatprep.subr.mxu0 0.0
    %463 = vmatpush1.msra.mxu0 0.0
    %464 = vmatprep.subr.mxu0 0.0
    %465 = vmatpush1.msra.mxu0 0.0
    %466 = vmatprep.subr.mxu0 0.0
    %467 = vmatpush1.msra.mxu0 0.0
    %468 = vmatprep.subr.mxu0 0.0
    %469 = vmatpush1.msra.mxu0 0.0
    %470 = vmatprep.subr.mxu0 0.0
    %471 = vmatpush1.msra.mxu0 0.0
    %472 = vmatprep.subr.mxu0 0.0
    %473 = vmatpush1.msra.mxu0 0.0
    %474 = vmatprep.subr.mxu0 0.0
    %475 = vmatpush1.msra.mxu0 0.0
    %476 = vmatprep.subr.mxu0 0.0
    %477 = vmatpush1.msra.mxu0 0.0
    %478 = vmatprep.subr.mxu0 0.0
    %479 = vmatpush1.msra.mxu0 0.0
    %480 = vmatprep.subr.mxu0 0.0
    %481 = vmatpush1.msra.mxu0 0.0
    %482 = vmatprep.subr.mxu0 0.0
    %483 = vmatpush1.msra.mxu0 0.0
    %484 = vmatprep.subr.mxu0 0.0
    %485 = vmatpush1.msra.mxu0 0.0
    %486 = vmatprep.subr.mxu0 0.0
    %487 = vmatpush1.msra.mxu0 %v157
    %488 = vmatprep.subr.mxu0 0.0
    %489 = vmatpush1.msra.mxu0 %v156
    %490 = vmatprep.subr.mxu0 0.0
    %491 = vmatpush1.msra.mxu0 %v155
    %492 = vmatprep.subr.mxu0 0.0
    %493 = vmatpush1.msra.mxu0 %v154
    %494 = vmatprep.subr.mxu0 0.0
    %495 = vmatpush2.msra.mxu0 0.0
    %496 = vmatprep.subr.mxu0 0.0
    %497 = vmatpush2.msra.mxu0 0.0
    %498 = vmatprep.subr.mxu0 0.0
    %499 = vmatpush2.msra.mxu0 0.0
    %500 = vmatprep.subr.mxu0 0.0
    %501 = vmatpush2.msra.mxu0 0.0
    %502 = vmatprep.subr.mxu0 0.0
    %503 = vmatpush2.msra.mxu0 0.0
    %504 = vmatprep.subr.mxu0 0.0
    %505 = vmatpush2.msra.mxu0 0.0
    %506 = vmatprep.subr.mxu0 0.0
    %507 = vmatpush2.msra.mxu0 0.0
    %508 = vmatprep.subr.mxu0 0.0
    %509 = vmatpush2.msra.mxu0 0.0
    %510 = vmatprep.subr.mxu0 0.0
    %511 = vmatpush2.msra.mxu0 0.0
    %512 = vmatprep.subr.mxu0 0.0
    %513 = vmatpush2.msra.mxu0 0.0
    %514 = vmatprep.subr.mxu0 0.0
    %515 = vmatpush2.msra.mxu0 0.0
    %516 = vmatprep.subr.mxu0 0.0
    %517 = vmatpush2.msra.mxu0 0.0
    %518 = vmatprep.subr.mxu0 0.0
    %519 = vmatpush2.msra.mxu0 0.0
    %520 = vmatprep.subr.mxu0 0.0
    %521 = vmatpush2.msra.mxu0 0.0
    %522 = vmatprep.subr.mxu0 0.0
    %523 = vmatpush2.msra.mxu0 0.0
    %524 = vmatprep.subr.mxu0 0.0
    %525 = vmatpush2.msra.mxu0 0.0
    %526 = vmatprep.mubr.f32.mxu0 0.0
    %527 = vmatmul.mubr.f32.gmra.mxu0 %v460
    %v528 = vpop.f32.mrf.mxu0
    %v529 = vadd.f32 0.0, %v528
    %v530 = vpop.f32.mrf.mxu0
    %531 = vdwg.mxu0
    %v532 = vadd.f32 %v131, %v529
    %v533 = vxor.u32 %v532, 2147483648
    %v534 = vmul.f32 %v533, 1.442695
    %v535 = vpow.pop %v534
    %v536 = vadd.f32 %v535, 1.0
    %v537 = vrcp.pop %v536
    %v538 = vmul.f32 1.0, %v537
    %v539 = vtanh.pop %v532
    %v540 = vmul.f32 %v538, %v450
    %542 = vrot.lane.b32.xlu0 %v539, 64
    %v543 = vpop.permute.xlu0 %542
    %v545 = vmul.f32 %v538, %v543
    %547 = vrot.lane.b32.xlu0 %v545, 32
    %v548 = vpop.permute.xlu0 %547
    %v550 = vadd.f32 %v540, %v548
    %v551 = vtanh.pop %v550
    %553 = vrot.lane.b32.xlu0 %v551, 64
    %v554 = vpop.permute.xlu0 %553
    %v556 = vmul.f32 %v538, %v554
    %558 = vrot.lane.b32.xlu0 %v556, 32
    %v559 = vpop.permute.xlu0 %558
    %v560 = vsel %vm158, %v559, 0
    %562 = vmatprep.subr.mxu0 0.0
    %563 = vmatpush1.msra.mxu0 0.0
    %564 = vmatprep.subr.mxu0 0.0
    %565 = vmatpush1.msra.mxu0 0.0
    %566 = vmatprep.subr.mxu0 0.0
    %567 = vmatpush1.msra.mxu0 0.0
    %568 = vmatprep.subr.mxu0 0.0
    %569 = vmatpush1.msra.mxu0 0.0
    %570 = vmatprep.subr.mxu0 0.0
    %571 = vmatpush1.msra.mxu0 0.0
    %572 = vmatprep.subr.mxu0 0.0
    %573 = vmatpush1.msra.mxu0 0.0
    %574 = vmatprep.subr.mxu0 0.0
    %575 = vmatpush1.msra.mxu0 0.0
    %576 = vmatprep.subr.mxu0 0.0
    %577 = vmatpush1.msra.mxu0 0.0
    %578 = vmatprep.subr.mxu0 0.0
    %579 = vmatpush1.msra.mxu0 0.0
    %580 = vmatprep.subr.mxu0 0.0
    %581 = vmatpush1.msra.mxu0 0.0
    %582 = vmatprep.subr.mxu0 0.0
    %583 = vmatpush1.msra.mxu0 0.0
    %584 = vmatprep.subr.mxu0 0.0
    %585 = vmatpush1.msra.mxu0 0.0
    %586 = vmatprep.subr.mxu0 0.0
    %587 = vmatpush1.msra.mxu0 %v157
    %588 = vmatprep.subr.mxu0 0.0
    %589 = vmatpush1.msra.mxu0 %v156
    %590 = vmatprep.subr.mxu0 0.0
    %591 = vmatpush1.msra.mxu0 %v155
    %592 = vmatprep.subr.mxu0 0.0
    %593 = vmatpush1.msra.mxu0 %v154
    %594 = vmatprep.subr.mxu0 0.0
    %595 = vmatpush2.msra.mxu0 0.0
    %596 = vmatprep.subr.mxu0 0.0
    %597 = vmatpush2.msra.mxu0 0.0
    %598 = vmatprep.subr.mxu0 0.0
    %599 = vmatpush2.msra.mxu0 0.0
    %600 = vmatprep.subr.mxu0 0.0
    %601 = vmatpush2.msra.mxu0 0.0
    %602 = vmatprep.subr.mxu0 0.0
    %603 = vmatpush2.msra.mxu0 0.0
    %604 = vmatprep.subr.mxu0 0.0
    %605 = vmatpush2.msra.mxu0 0.0
    %606 = vmatprep.subr.mxu0 0.0
    %607 = vmatpush2.msra.mxu0 0.0
    %608 = vmatprep.subr.mxu0 0.0
    %609 = vmatpush2.msra.mxu0 0.0
    %610 = vmatprep.subr.mxu0 0.0
    %611 = vmatpush2.msra.mxu0 0.0
    %612 = vmatprep.subr.mxu0 0.0
    %613 = vmatpush2.msra.mxu0 0.0
    %614 = vmatprep.subr.mxu0 0.0
    %615 = vmatpush2.msra.mxu0 0.0
    %616 = vmatprep.subr.mxu0 0.0
    %617 = vmatpush2.msra.mxu0 0.0
    %618 = vmatprep.subr.mxu0 0.0
    %619 = vmatpush2.msra.mxu0 0.0
    %620 = vmatprep.subr.mxu0 0.0
    %621 = vmatpush2.msra.mxu0 0.0
    %622 = vmatprep.subr.mxu0 0.0
    %623 = vmatpush2.msra.mxu0 0.0
    %624 = vmatprep.subr.mxu0 0.0
    %625 = vmatpush2.msra.mxu0 0.0
    %626 = vmatprep.mubr.f32.mxu0 0.0
    %627 = vmatmul.mubr.f32.gmra.mxu0 %v560
    %v628 = vpop.f32.mrf.mxu0
    %v629 = vadd.f32 0.0, %v628
    %v630 = vpop.f32.mrf.mxu0
    %631 = vdwg.mxu0
    %v632 = vadd.f32 %v136, %v629
    %v633 = vxor.u32 %v632, 2147483648
    %v634 = vmul.f32 %v633, 1.442695
    %v635 = vpow.pop %v634
    %v636 = vadd.f32 %v635, 1.0
    %v637 = vrcp.pop %v636
    %v638 = vmul.f32 1.0, %v637
    %v639 = vtanh.pop %v632
    %v640 = vmul.f32 %v638, %v550
    %642 = vrot.lane.b32.xlu0 %v639, 64
    %v643 = vpop.permute.xlu0 %642
    %v645 = vmul.f32 %v638, %v643
    %647 = vrot.lane.b32.xlu0 %v645, 32
    %v648 = vpop.permute.xlu0 %647
    %v650 = vadd.f32 %v640, %v648
    %v651 = vtanh.pop %v650
    %653 = vrot.lane.b32.xlu0 %v651, 64
    %v654 = vpop.permute.xlu0 %653
    %v656 = vmul.f32 %v638, %v654
    %658 = vrot.lane.b32.xlu0 %v656, 32
    %v659 = vpop.permute.xlu0 %658
    %v660 = vsel %vm158, %v659, 0
    %662 = vmatprep.subr.mxu0 0.0
    %663 = vmatpush1.msra.mxu0 0.0
    %664 = vmatprep.subr.mxu0 0.0
    %665 = vmatpush1.msra.mxu0 0.0
    %666 = vmatprep.subr.mxu0 0.0
    %667 = vmatpush1.msra.mxu0 0.0
    %668 = vmatprep.subr.mxu0 0.0
    %669 = vmatpush1.msra.mxu0 0.0
    %670 = vmatprep.subr.mxu0 0.0
    %671 = vmatpush1.msra.mxu0 0.0
    %672 = vmatprep.subr.mxu0 0.0
    %673 = vmatpush1.msra.mxu0 0.0
    %674 = vmatprep.subr.mxu0 0.0
    %675 = vmatpush1.msra.mxu0 0.0
    %676 = vmatprep.subr.mxu0 0.0
    %677 = vmatpush1.msra.mxu0 0.0
    %678 = vmatprep.subr.mxu0 0.0
    %679 = vmatpush1.msra.mxu0 0.0
    %680 = vmatprep.subr.mxu0 0.0
    %681 = vmatpush1.msra.mxu0 0.0
    %682 = vmatprep.subr.mxu0 0.0
    %683 = vmatpush1.msra.mxu0 0.0
    %684 = vmatprep.subr.mxu0 0.0
    %685 = vmatpush1.msra.mxu0 0.0
    %686 = vmatprep.subr.mxu0 0.0
    %687 = vmatpush1.msra.mxu0 %v157
    %688 = vmatprep.subr.mxu0 0.0
    %689 = vmatpush1.msra.mxu0 %v156
    %690 = vmatprep.subr.mxu0 0.0
    %691 = vmatpush1.msra.mxu0 %v155
    %692 = vmatprep.subr.mxu0 0.0
    %693 = vmatpush1.msra.mxu0 %v154
    %694 = vmatprep.subr.mxu0 0.0
    %695 = vmatpush2.msra.mxu0 0.0
    %696 = vmatprep.subr.mxu0 0.0
    %697 = vmatpush2.msra.mxu0 0.0
    %698 = vmatprep.subr.mxu0 0.0
    %699 = vmatpush2.msra.mxu0 0.0
    %700 = vmatprep.subr.mxu0 0.0
    %701 = vmatpush2.msra.mxu0 0.0
    %702 = vmatprep.subr.mxu0 0.0
    %703 = vmatpush2.msra.mxu0 0.0
    %704 = vmatprep.subr.mxu0 0.0
    %705 = vmatpush2.msra.mxu0 0.0
    %706 = vmatprep.subr.mxu0 0.0
    %707 = vmatpush2.msra.mxu0 0.0
    %708 = vmatprep.subr.mxu0 0.0
    %709 = vmatpush2.msra.mxu0 0.0
    %710 = vmatprep.subr.mxu0 0.0
    %711 = vmatpush2.msra.mxu0 0.0
    %712 = vmatprep.subr.mxu0 0.0
    %713 = vmatpush2.msra.mxu0 0.0
    %714 = vmatprep.subr.mxu0 0.0
    %715 = vmatpush2.msra.mxu0 0.0
    %716 = vmatprep.subr.mxu0 0.0
    %717 = vmatpush2.msra.mxu0 0.0
    %718 = vmatprep.subr.mxu0 0.0
    %719 = vmatpush2.msra.mxu0 0.0
    %720 = vmatprep.subr.mxu0 0.0
    %721 = vmatpush2.msra.mxu0 0.0
    %722 = vmatprep.subr.mxu0 0.0
    %723 = vmatpush2.msra.mxu0 0.0
    %724 = vmatprep.subr.mxu0 0.0
    %725 = vmatpush2.msra.mxu0 0.0
    %726 = vmatprep.mubr.f32.mxu0 0.0
    %727 = vmatmul.mubr.f32.gmra.mxu0 %v660
    %v728 = vpop.f32.mrf.mxu0
    %v729 = vadd.f32 0.0, %v728
    %v730 = vpop.f32.mrf.mxu0
    %731 = vdwg.mxu0
    %v732 = vadd.f32 %v141, %v729
    %v733 = vxor.u32 %v732, 2147483648
    %v734 = vmul.f32 %v733, 1.442695
    %v735 = vpow.pop %v734
    %v736 = vadd.f32 %v735, 1.0
    %v737 = vrcp.pop %v736
    %v738 = vmul.f32 1.0, %v737
    %v739 = vtanh.pop %v732
    %v740 = vmul.f32 %v738, %v650
    %742 = vrot.lane.b32.xlu0 %v739, 64
    %v743 = vpop.permute.xlu0 %742
    %v745 = vmul.f32 %v738, %v743
    %747 = vrot.lane.b32.xlu0 %v745, 32
    %v748 = vpop.permute.xlu0 %747
    %v750 = vadd.f32 %v740, %v748
    %v751 = vtanh.pop %v750
    %753 = vrot.lane.b32.xlu0 %v751, 64
    %v754 = vpop.permute.xlu0 %753
    %v756 = vmul.f32 %v738, %v754
    %758 = vrot.lane.b32.xlu0 %v756, 32
    %v759 = vpop.permute.xlu0 %758
    %v760 = vsel %vm158, %v759, 0
    %762 = vmatprep.subr.mxu0 0.0
    %763 = vmatpush1.msra.mxu0 0.0
    %764 = vmatprep.subr.mxu0 0.0
    %765 = vmatpush1.msra.mxu0 0.0
    %766 = vmatprep.subr.mxu0 0.0
    %767 = vmatpush1.msra.mxu0 0.0
    %768 = vmatprep.subr.mxu0 0.0
    %769 = vmatpush1.msra.mxu0 0.0
    %770 = vmatprep.subr.mxu0 0.0
    %771 = vmatpush1.msra.mxu0 0.0
    %772 = vmatprep.subr.mxu0 0.0
    %773 = vmatpush1.msra.mxu0 0.0
    %774 = vmatprep.subr.mxu0 0.0
    %775 = vmatpush1.msra.mxu0 0.0
    %776 = vmatprep.subr.mxu0 0.0
    %777 = vmatpush1.msra.mxu0 0.0
    %778 = vmatprep.subr.mxu0 0.0
    %779 = vmatpush1.msra.mxu0 0.0
    %780 = vmatprep.subr.mxu0 0.0
    %781 = vmatpush1.msra.mxu0 0.0
    %782 = vmatprep.subr.mxu0 0.0
    %783 = vmatpush1.msra.mxu0 0.0
    %784 = vmatprep.subr.mxu0 0.0
    %785 = vmatpush1.msra.mxu0 0.0
    %786 = vmatprep.subr.mxu0 0.0
    %787 = vmatpush1.msra.mxu0 %v157
    %788 = vmatprep.subr.mxu0 0.0
    %789 = vmatpush1.msra.mxu0 %v156
    %790 = vmatprep.subr.mxu0 0.0
    %791 = vmatpush1.msra.mxu0 %v155
    %792 = vmatprep.subr.mxu0 0.0
    %793 = vmatpush1.msra.mxu0 %v154
    %794 = vmatprep.subr.mxu0 0.0
    %795 = vmatpush2.msra.mxu0 0.0
    %796 = vmatprep.subr.mxu0 0.0
    %797 = vmatpush2.msra.mxu0 0.0
    %798 = vmatprep.subr.mxu0 0.0
    %799 = vmatpush2.msra.mxu0 0.0
    %800 = vmatprep.subr.mxu0 0.0
    %801 = vmatpush2.msra.mxu0 0.0
    %802 = vmatprep.subr.mxu0 0.0
    %803 = vmatpush2.msra.mxu0 0.0
    %804 = vmatprep.subr.mxu0 0.0
    %805 = vmatpush2.msra.mxu0 0.0
    %806 = vmatprep.subr.mxu0 0.0
    %807 = vmatpush2.msra.mxu0 0.0
    %808 = vmatprep.subr.mxu0 0.0
    %809 = vmatpush2.msra.mxu0 0.0
    %810 = vmatprep.subr.mxu0 0.0
    %811 = vmatpush2.msra.mxu0 0.0
    %812 = vmatprep.subr.mxu0 0.0
    %813 = vmatpush2.msra.mxu0 0.0
    %814 = vmatprep.subr.mxu0 0.0
    %815 = vmatpush2.msra.mxu0 0.0
    %816 = vmatprep.subr.mxu0 0.0
    %817 = vmatpush2.msra.mxu0 0.0
    %818 = vmatprep.subr.mxu0 0.0
    %819 = vmatpush2.msra.mxu0 0.0
    %820 = vmatprep.subr.mxu0 0.0
    %821 = vmatpush2.msra.mxu0 0.0
    %822 = vmatprep.subr.mxu0 0.0
    %823 = vmatpush2.msra.mxu0 0.0
    %824 = vmatprep.subr.mxu0 0.0
    %825 = vmatpush2.msra.mxu0 0.0
    %826 = vmatprep.mubr.f32.mxu0 0.0
    %827 = vmatmul.mubr.f32.gmra.mxu0 %v760
    %v828 = vpop.f32.mrf.mxu0
    %v829 = vadd.f32 0.0, %v828
    %v830 = vpop.f32.mrf.mxu0
    %831 = vdwg.mxu0
    %v832 = vadd.f32 %v146, %v829
    %v833 = vxor.u32 %v832, 2147483648
    %v834 = vmul.f32 %v833, 1.442695
    %v835 = vpow.pop %v834
    %v836 = vadd.f32 %v835, 1.0
    %v837 = vrcp.pop %v836
    %v838 = vmul.f32 1.0, %v837
    %v839 = vtanh.pop %v832
    %v840 = vmul.f32 %v838, %v750
    %842 = vrot.lane.b32.xlu0 %v839, 64
    %v843 = vpop.permute.xlu0 %842
    %v845 = vmul.f32 %v838, %v843
    %847 = vrot.lane.b32.xlu0 %v845, 32
    %v848 = vpop.permute.xlu0 %847
    %v850 = vadd.f32 %v840, %v848
    %v851 = vtanh.pop %v850
    %853 = vrot.lane.b32.xlu0 %v851, 64
    %v854 = vpop.permute.xlu0 %853
    %v856 = vmul.f32 %v838, %v854
    %858 = vrot.lane.b32.xlu0 %v856, 32
    %v859 = vpop.permute.xlu0 %858
    %v860 = vsel %vm158, %v859, 0
    %862 = vmatprep.subr.mxu0 0.0
    %863 = vmatpush1.msra.mxu0 0.0
    %864 = vmatprep.subr.mxu0 0.0
    %865 = vmatpush1.msra.mxu0 0.0
    %866 = vmatprep.subr.mxu0 0.0
    %867 = vmatpush1.msra.mxu0 0.0
    %868 = vmatprep.subr.mxu0 0.0
    %869 = vmatpush1.msra.mxu0 0.0
    %870 = vmatprep.subr.mxu0 0.0
    %871 = vmatpush1.msra.mxu0 0.0
    %872 = vmatprep.subr.mxu0 0.0
    %873 = vmatpush1.msra.mxu0 0.0
    %874 = vmatprep.subr.mxu0 0.0
    %875 = vmatpush1.msra.mxu0 0.0
    %876 = vmatprep.subr.mxu0 0.0
    %877 = vmatpush1.msra.mxu0 0.0
    %878 = vmatprep.subr.mxu0 0.0
    %879 = vmatpush1.msra.mxu0 0.0
    %880 = vmatprep.subr.mxu0 0.0
    %881 = vmatpush1.msra.mxu0 0.0
    %882 = vmatprep.subr.mxu0 0.0
    %883 = vmatpush1.msra.mxu0 0.0
    %884 = vmatprep.subr.mxu0 0.0
    %885 = vmatpush1.msra.mxu0 0.0
    %886 = vmatprep.subr.mxu0 0.0
    %887 = vmatpush1.msra.mxu0 %v157
    %888 = vmatprep.subr.mxu0 0.0
    %889 = vmatpush1.msra.mxu0 %v156
    %890 = vmatprep.subr.mxu0 0.0
    %891 = vmatpush1.msra.mxu0 %v155
    %892 = vmatprep.subr.mxu0 0.0
    %893 = vmatpush1.msra.mxu0 %v154
    %894 = vmatprep.subr.mxu0 0.0
    %895 = vmatpush2.msra.mxu0 0.0
    %896 = vmatprep.subr.mxu0 0.0
    %897 = vmatpush2.msra.mxu0 0.0
    %898 = vmatprep.subr.mxu0 0.0
    %899 = vmatpush2.msra.mxu0 0.0
    %900 = vmatprep.subr.mxu0 0.0
    %901 = vmatpush2.msra.mxu0 0.0
    %902 = vmatprep.subr.mxu0 0.0
    %903 = vmatpush2.msra.mxu0 0.0
    %904 = vmatprep.subr.mxu0 0.0
    %905 = vmatpush2.msra.mxu0 0.0
    %906 = vmatprep.subr.mxu0 0.0
    %907 = vmatpush2.msra.mxu0 0.0
    %908 = vmatprep.subr.mxu0 0.0
    %909 = vmatpush2.msra.mxu0 0.0
    %910 = vmatprep.subr.mxu0 0.0
    %911 = vmatpush2.msra.mxu0 0.0
    %912 = vmatprep.subr.mxu0 0.0
    %913 = vmatpush2.msra.mxu0 0.0
    %914 = vmatprep.subr.mxu0 0.0
    %915 = vmatpush2.msra.mxu0 0.0
    %916 = vmatprep.subr.mxu0 0.0
    %917 = vmatpush2.msra.mxu0 0.0
    %918 = vmatprep.subr.mxu0 0.0
    %919 = vmatpush2.msra.mxu0 0.0
    %920 = vmatprep.subr.mxu0 0.0
    %921 = vmatpush2.msra.mxu0 0.0
    %922 = vmatprep.subr.mxu0 0.0
    %923 = vmatpush2.msra.mxu0 0.0
    %924 = vmatprep.subr.mxu0 0.0
    %925 = vmatpush2.msra.mxu0 0.0
    %926 = vmatprep.mubr.f32.mxu0 0.0
    %927 = vmatmul.mubr.f32.gmra.mxu0 %v860
    %v928 = vpop.f32.mrf.mxu0
    %v929 = vadd.f32 0.0, %v928
    %v930 = vpop.f32.mrf.mxu0
    %931 = vdwg.mxu0
    %v932 = vadd.f32 %v151, %v929
    %v933 = vxor.u32 %v932, 2147483648
    %v934 = vmul.f32 %v933, 1.442695
    %v935 = vpow.pop %v934
    %v936 = vadd.f32 %v935, 1.0
    %v937 = vrcp.pop %v936
    %v938 = vmul.f32 1.0, %v937
    %v939 = vtanh.pop %v932
    %v940 = vmul.f32 %v938, %v850
    %942 = vrot.lane.b32.xlu0 %v939, 64
    %v943 = vpop.permute.xlu0 %942
    %v945 = vmul.f32 %v938, %v943
    %947 = vrot.lane.b32.xlu0 %v945, 32
    %v948 = vpop.permute.xlu0 %947
    %v950 = vadd.f32 %v940, %v948
    %v951 = vtanh.pop %v950
    %953 = vrot.lane.b32.xlu0 %v951, 64
    %v954 = vpop.permute.xlu0 %953
    %v956 = vmul.f32 %v938, %v954
    %958 = vrot.lane.b32.xlu0 %v956, 32
    %v959 = vpop.permute.xlu0 %958
    %961 = vst.msk [vmem:[#allocation2] sm:$0xff] %vm158, %v959
    // Predicated region
    $region14: #{tpu_custom_call.1} parent=1 // pred_check
      _
    $region15: #{tpu_custom_call.1} parent=1 // pred_check_branch
      %963 = sbr.rel (0) target = $region17
    $region16: #{tpu_custom_call.1} parent=1 // pred_region
      %s965 = ssub.s32 128, 128
      %966 = vsyncadd [#allocation3], %s965
      %s968 = sshll.u32 [#allocation2], 4
      %s969 = int_to_ptr.vmem [resolvable:$true] %s968
      %971 = dma.vmem_to_hbm [thread:$0]  %s969, 128, %s3, [#allocation3]
    $region17: #{tpu_custom_call.1} parent=1 // pred_fallthru
      _
    // Predicated region
    $region18: #{tpu_custom_call.1} parent=1 // pred_check
      _
    $region19: #{tpu_custom_call.1} parent=1 // pred_check_branch
      %973 = sbr.rel (0) target = $region21
    $region20: #{tpu_custom_call.1} parent=1 // pred_region
      %974 = dma.done [#allocation3], 128
    $region21: #{tpu_custom_call.1} parent=1 // pred_fallthru
      _
    %975 = vsyncpa [#allocation3], 1

</llo_original>
